<compile_context>
chip_gen: v7x
topology: tpu7x:2x2x1
jax: 0.10.0
libtpu: 0.0.40
codegen_flags: <defaults>
</compile_context>

<pallas_src>
import jax
import jax.numpy as jnp
from jax.experimental import pallas as pl
from jax.experimental.pallas import tpu as pltpu

# ---- InDI / JointIndi configuration (synthetic, matches module defaults) ----
NUM_TIMESTEPS = 20          # schedule_opt['n_timestep']; must be even
LINEAR_INDI_A = 1.0         # linear_indi 'a'
E_CONST = 0.01              # InDI e
W_INPUT_LOSS = 0.0          # JointIndi w_input_loss default


# --------------------------------------------------------------------------- #
# In-kernel PRNG capability probe: use pltpu.prng_seed + pltpu.stateful_normal
# when available; otherwise fall back to a packed host-noise input.
# --------------------------------------------------------------------------- #
def _probe_inkernel_rng():
    if not (hasattr(pltpu, "prng_seed") and hasattr(pltpu, "stateful_normal")):
        return False
    try:
        def _k(seed_ref, o_ref):
            pltpu.prng_seed(seed_ref[0])
            o_ref[...] = pltpu.stateful_normal((8, 128), jnp.float32)

        out = pl.pallas_call(
            _k,
            out_shape=jax.ShapeDtypeStruct((8, 128), jnp.float32),
            in_specs=[pl.BlockSpec(memory_space=pltpu.MemorySpace.SMEM)],
        )(jnp.zeros((1,), jnp.int32))
        jax.block_until_ready(out)
        return True
    except Exception:
        return False


HAVE_INKERNEL_RNG = _probe_inkernel_rng()


def make_joint_kernel(B, H, W, e, inkernel_rng):
    """One grid step == one InDI branch over the whole (lane-packed) batch."""
    NBW = B * W

    def branch_body(br, p_ref, tgt_ref, tmap_ref, noise, out_ref):
        # ---- border masks for in-kernel 'same' zero padding -----------------
        # Lanes are packed as b*W + w, so the masks also stop cross-sample leaks.
        col = jax.lax.broadcasted_iota(jnp.int32, (H, NBW), 1) % W
        row = jax.lax.broadcasted_iota(jnp.int32, (H, NBW), 0)
        keep_cm = col != 0          # tap reads x[:, j-1]
        keep_cp = col != W - 1      # tap reads x[:, j+1]
        keep_rm = row != 0          # tap reads x[i-1, :]
        keep_rp = row != H - 1      # tap reads x[i+1, :]

        def lane_shifts(x):
            # [dx=0,1,2] -> x shifted by dx-1 columns; pltpu.roll -> XLU slot.
            xm = jnp.where(keep_cm, pltpu.roll(x, 1, axis=1), 0.0)
            xp = jnp.where(keep_cp, pltpu.roll(x, NBW - 1, axis=1), 0.0)
            return (xm, x, xp)

        def row_shift(x, d):
            if d == 0:
                return x
            if d < 0:
                return jnp.where(keep_rm, pltpu.roll(x, 1, axis=0), 0.0)
            return jnp.where(keep_rp, pltpu.roll(x, H - 1, axis=0), 0.0)

        # ---- branch inputs (channel select / swap done here, not on host) ---
        x_start = tgt_ref[br]            # (H, B*W) target channel `br`
        x_end = tgt_ref[1 - br]          # (H, B*W) conditional input channel
        t_map = tmap_ref[0]              # (1, B*W) per-sample t, lane-broadcast

        # InDI q_sample (fused): x_t = x_start + t*((x_end - x_start) + e*noise)
        x_noisy = x_start + t_map * ((x_end - x_start) + e * noise)

        # conditional denoise_fn(cat([input, x_noisy], 1), t): synthetic head =
        # 3x3 same-conv (2 -> 1 ch) + bias + wt * t.  SMEM param reads hoisted.
        w = [p_ref[br, k] for k in range(20)]
        acc = jnp.zeros((H, NBW), jnp.float32)
        for c, plane in enumerate((x_end, x_noisy)):
            cols = lane_shifts(plane)            # 2 lane rolls, reused across dy
            for dy in range(3):
                s = (w[c * 9 + dy * 3 + 0] * cols[0]
                     + w[c * 9 + dy * 3 + 1] * cols[1]
                     + w[c * 9 + dy * 3 + 2] * cols[2])
                # row shift of the dx-weighted sum (shift/mask are linear ops)
                acc = acc + row_shift(s, dy - 1)
        recon = acc + w[18] + w[19] * t_map

        # per-branch L1 sum: one vectorized reduction over the packed plane
        out_ref[...] = jnp.reshape(jnp.sum(jnp.abs(x_start - recon)), (1, 1, 1))

    if inkernel_rng:
        def kernel(p_ref, seed_ref, tgt_ref, tmap_ref, out_ref):
            br = pl.program_id(0)
            pltpu.prng_seed(seed_ref[br])
            noise = pltpu.stateful_normal((H, NBW), jnp.float32)
            branch_body(br, p_ref, tgt_ref, tmap_ref, noise, out_ref)
    else:
        def kernel(p_ref, seed_ref, tgt_ref, tmap_ref, nz_ref, out_ref):
            br = pl.program_id(0)
            branch_body(br, p_ref, tgt_ref, tmap_ref, nz_ref[0], out_ref)

    return kernel


def run_joint_indi(params_all, seeds, tgt_pk, t_map, noise_pk, B, W):
    """Single fused pallas_call over both InDI branches.

    params_all: (2, 20) f32   per-branch synthetic denoise-head params (-> SMEM)
    seeds:      (2,)    i32   per-branch PRNG seeds (-> SMEM)
    tgt_pk:     (2, H, B*W)   lane-packed target, channel-major
    t_map:      (2, 1, B*W)   per-branch, per-sample t broadcast over each W segment
    noise_pk:   (2, H, B*W) or None  packed gaussian noise (None -> in-kernel PRNG)
    Returns (2, 1, 1) per-branch sum |x_start - recon|.
    """
    C, H, NBW = tgt_pk.shape
    inkernel_rng = noise_pk is None

    in_specs = [
        # Full packed target: constant index_map -> resident across both branch
        # steps (one DMA total); channels are selected / swapped in-kernel.
        pl.BlockSpec((C, H, NBW), lambda br, p, s: (0, 0, 0)),
        pl.BlockSpec((1, 1, NBW), lambda br, p, s: (br, 0, 0)),
    ]
    args = [tgt_pk, t_map]
    if not inkernel_rng:
        in_specs.append(pl.BlockSpec((1, H, NBW), lambda br, p, s: (br, 0, 0)))
        args.append(noise_pk)

    grid_spec = pltpu.PrefetchScalarGridSpec(
        num_scalar_prefetch=2,            # params_all, seeds land in SMEM
        grid=(2,),                        # branch axis (indi1 / indi2)
        in_specs=in_specs,
        out_specs=pl.BlockSpec((1, 1, 1), lambda br, p, s: (br, 0, 0)),
    )

    return pl.pallas_call(
        make_joint_kernel(B, H, W, E_CONST, inkernel_rng),
        out_shape=jax.ShapeDtypeStruct((2, 1, 1), jnp.float32),
        grid_spec=grid_spec,
        # TODO(synk): use pltpu.CORE_PARALLEL here on v7x so each TC takes one branch.
        compiler_params=pltpu.CompilerParams(
            dimension_semantics=("parallel",)),
    )(params_all, seeds, *args)


def sample_t_custom(key, batch_size):
    """IndiCustomT.sample_t with t_sampling_mode='linear_indi'."""
    maxv = NUM_TIMESTEPS // 2
    k1, k2 = jax.random.split(key)
    t = jax.random.randint(k1, (batch_size,), 1, maxv)
    alpha = 1.0 / (LINEAR_INDI_A + 1.0)
    probab = jax.random.uniform(k2, (batch_size,))
    t = jnp.where(probab > alpha, maxv, t)
    return t.astype(jnp.float32) / NUM_TIMESTEPS


def init_params(key):
    k1, k2 = jax.random.split(key)
    # per-branch synthetic denoise head: 18 conv weights + 1 bias + 1 time scale
    p1 = 0.1 * jax.random.normal(k1, (20,), jnp.float32)
    p2 = 0.1 * jax.random.normal(k2, (20,), jnp.float32)
    return {
        'denoise_ch1': p1,
        'denoise_ch2': p2,
        'alpha_param': jnp.float32(0.0),   # nn.Parameter(0.0)
        'offset_param': jnp.float32(0.0),  # nn.Parameter(0.0)
        'scale_param': jnp.float32(1.0),   # nn.Parameter(1.0)
    }


def joint_indi_forward(params, x_in, key):
    """JointIndi.forward(x) == p_losses(x_in). Returns (scalar loss, log dict)."""
    target = x_in['target']                          # (B, 2, H, W) NCHW
    B, C, H, W = target.shape

    k_t1, k_t2, k_seed, k_noise = jax.random.split(key, 4)
    t_all = jnp.stack([sample_t_custom(k_t1, B),
                       sample_t_custom(k_t2, B)])    # (2, B) per-branch t
    params_all = jnp.stack([params['denoise_ch1'], params['denoise_ch2']])
    seeds = jax.random.randint(k_seed, (2,), 0, jnp.iinfo(jnp.int32).max,
                               dtype=jnp.int32)

    # Lane-dense packing (no host padding): fold batch into the lane axis.
    # tgt_pk[c, h, b*W + w] = target[b, c, h, w]
    tgt_pk = jnp.transpose(target.astype(jnp.float32),
                           (1, 2, 0, 3)).reshape(C, H, B * W)
    # per-sample t broadcast over each W-wide lane segment
    t_map = jnp.repeat(t_all, W, axis=1).reshape(2, 1, B * W)

    noise_pk = None
    if not HAVE_INKERNEL_RNG:
        noise = jax.random.normal(k_noise, (2, B, H, W), jnp.float32)
        noise_pk = jnp.transpose(noise, (0, 2, 1, 3)).reshape(2, H, B * W)

    lsums = run_joint_indi(params_all, seeds, tgt_pk, t_map, noise_pk, B, W)

    n_elem = B * H * W                     # nn.L1Loss(reduction='mean') per branch
    loss_ch = lsums[:, 0, 0] / n_elem
    loss_splitting = 0.5 * (loss_ch[0] + loss_ch[1])
    loss_input = 0.0

    log = {
        'loss_splitting': loss_splitting,
        'alpha': jax.nn.sigmoid(params['alpha_param']),
        'offset': params['offset_param'],
        'scale': params['scale_param'],
    }
    return loss_splitting + W_INPUT_LOSS * loss_input, log


if __name__ == "__main__":
    key = jax.random.PRNGKey(0)
    k_param, k_data, k_fwd = jax.random.split(key, 3)

    params = init_params(k_param)
    B, C, H, W = 2, 2, 16, 16
    target = jax.random.normal(k_data, (B, C, H, W), jnp.float32)
    x_in = {'target': target}

    loss, log = jax.jit(joint_indi_forward)(params, x_in, k_fwd)
    loss = jax.block_until_ready(loss)
    assert loss.shape == () and bool(jnp.isfinite(loss))
    print("KERNEL_OK")
</pallas_src>

<mosaic_0001>
module attributes {stable_mosaic.version = 11 : i64} {
  func.func @_k(%arg0: memref<1xi32, #tpu.memory_space<smem>>, %arg1: memref<8x128xf32, #tpu.memory_space<vmem>>) attributes {dimension_semantics = [], scalar_prefetch = 0 : i64, scratch_operands = 0 : i64, tpu.core_type = #tpu.core_type<tc>} {
    %c0 = arith.constant 0 : index
    %0 = memref.load %arg0[%c0] : memref<1xi32, #tpu.memory_space<smem>>
    "tpu.prng_set_seed_32"(%0) : (i32) -> ()
    %c0_i32 = arith.constant 0 : i32
    %c0_i32_0 = arith.constant 0 : i32
    %cst = arith.constant -0.99999994 : f32
    %cst_1 = arith.constant 1.000000e+00 : f32
    %1 = vector.broadcast %cst : f32 to vector<1x1xf32>
    %2 = vector.broadcast %cst_1 : f32 to vector<1x1xf32>
    %3 = "tpu.prng_random_bits"() : () -> vector<8x128xi32>
    %c9_i32 = arith.constant 9 : i32
    %4 = vector.broadcast %c9_i32 : i32 to vector<8x128xi32>
    %5 = arith.shrui %3, %4 : vector<8x128xi32>
    %c1065353216_i32 = arith.constant 1065353216 : i32
    %6 = vector.broadcast %c1065353216_i32 : i32 to vector<8x128xi32>
    %7 = arith.ori %5, %6 : vector<8x128xi32>
    %8 = tpu.bitcast %7 : vector<8x128xi32> -> vector<8x128xf32>
    %cst_2 = arith.constant 1.000000e+00 : f32
    %9 = vector.broadcast %cst_2 : f32 to vector<8x128xf32>
    %10 = arith.subf %8, %9 : vector<8x128xf32>
    %11 = arith.subf %2, %1 : vector<1x1xf32>
    %12 = vector.broadcast %11 : vector<1x1xf32> to vector<8x128xf32>
    %13 = arith.mulf %10, %12 : vector<8x128xf32>
    %14 = vector.broadcast %1 : vector<1x1xf32> to vector<8x128xf32>
    %15 = arith.addf %13, %14 : vector<8x128xf32>
    %16 = vector.broadcast %1 : vector<1x1xf32> to vector<8x128xf32>
    %17 = arith.maximumf %16, %15 : vector<8x128xf32>
    %cst_3 = arith.constant 0.000000e+00 : f32
    %18 = vector.broadcast %cst_3 : f32 to vector<8x128xf32>
    %19 = arith.subf %18, %17 : vector<8x128xf32>
    %20 = arith.mulf %17, %19 : vector<8x128xf32>
    %21 = math.log1p %20 : vector<8x128xf32>
    %cst_4 = arith.constant 0.000000e+00 : f32
    %22 = vector.broadcast %cst_4 : f32 to vector<8x128xf32>
    %23 = arith.subf %22, %21 : vector<8x128xf32>
    %cst_5 = arith.constant 5.000000e+00 : f32
    %24 = vector.broadcast %cst_5 : f32 to vector<8x128xf32>
    %25 = arith.cmpf olt, %23, %24 : vector<8x128xf32>
    %cst_6 = arith.constant 2.500000e+00 : f32
    %26 = vector.broadcast %cst_6 : f32 to vector<8x128xf32>
    %27 = arith.subf %23, %26 : vector<8x128xf32>
    %28 = math.sqrt %23 : vector<8x128xf32>
    %cst_7 = arith.constant 3.000000e+00 : f32
    %29 = vector.broadcast %cst_7 : f32 to vector<8x128xf32>
    %30 = arith.subf %28, %29 : vector<8x128xf32>
    %31 = arith.select %25, %27, %30 : vector<8x128xi1>, vector<8x128xf32>
    %cst_8 = arith.constant 2.81022636E-8 : f32
    %cst_9 = arith.constant -2.00214257E-4 : f32
    %32 = vector.broadcast %cst_8 : f32 to vector<8x128xf32>
    %33 = vector.broadcast %cst_9 : f32 to vector<8x128xf32>
    %34 = arith.select %25, %32, %33 : vector<8x128xi1>, vector<8x128xf32>
    %cst_10 = arith.constant 3.43273939E-7 : f32
    %cst_11 = arith.constant 1.00950558E-4 : f32
    %35 = vector.broadcast %cst_10 : f32 to vector<8x128xf32>
    %36 = vector.broadcast %cst_11 : f32 to vector<8x128xf32>
    %37 = arith.select %25, %35, %36 : vector<8x128xi1>, vector<8x128xf32>
    %38 = arith.mulf %34, %31 : vector<8x128xf32>
    %39 = arith.addf %37, %38 : vector<8x128xf32>
    %cst_12 = arith.constant -3.5233877E-6 : f32
    %cst_13 = arith.constant 0.00134934322 : f32
    %40 = vector.broadcast %cst_12 : f32 to vector<8x128xf32>
    %41 = vector.broadcast %cst_13 : f32 to vector<8x128xf32>
    %42 = arith.select %25, %40, %41 : vector<8x128xi1>, vector<8x128xf32>
    %43 = arith.mulf %39, %31 : vector<8x128xf32>
    %44 = arith.addf %42, %43 : vector<8x128xf32>
    %cst_14 = arith.constant -4.39150654E-6 : f32
    %cst_15 = arith.constant -0.00367342844 : f32
    %45 = vector.broadcast %cst_14 : f32 to vector<8x128xf32>
    %46 = vector.broadcast %cst_15 : f32 to vector<8x128xf32>
    %47 = arith.select %25, %45, %46 : vector<8x128xi1>, vector<8x128xf32>
    %48 = arith.mulf %44, %31 : vector<8x128xf32>
    %49 = arith.addf %47, %48 : vector<8x128xf32>
    %cst_16 = arith.constant 2.1858087E-4 : f32
    %cst_17 = arith.constant 0.00573950773 : f32
    %50 = vector.broadcast %cst_16 : f32 to vector<8x128xf32>
    %51 = vector.broadcast %cst_17 : f32 to vector<8x128xf32>
    %52 = arith.select %25, %50, %51 : vector<8x128xi1>, vector<8x128xf32>
    %53 = arith.mulf %49, %31 : vector<8x128xf32>
    %54 = arith.addf %52, %53 : vector<8x128xf32>
    %cst_18 = arith.constant -0.00125372503 : f32
    %cst_19 = arith.constant -0.0076224613 : f32
    %55 = vector.broadcast %cst_18 : f32 to vector<8x128xf32>
    %56 = vector.broadcast %cst_19 : f32 to vector<8x128xf32>
    %57 = arith.select %25, %55, %56 : vector<8x128xi1>, vector<8x128xf32>
    %58 = arith.mulf %54, %31 : vector<8x128xf32>
    %59 = arith.addf %57, %58 : vector<8x128xf32>
    %cst_20 = arith.constant -0.00417768164 : f32
    %cst_21 = arith.constant 0.00943887047 : f32
    %60 = vector.broadcast %cst_20 : f32 to vector<8x128xf32>
    %61 = vector.broadcast %cst_21 : f32 to vector<8x128xf32>
    %62 = arith.select %25, %60, %61 : vector<8x128xi1>, vector<8x128xf32>
    %63 = arith.mulf %59, %31 : vector<8x128xf32>
    %64 = arith.addf %62, %63 : vector<8x128xf32>
    %cst_22 = arith.constant 0.246640727 : f32
    %cst_23 = arith.constant 1.00167406 : f32
    %65 = vector.broadcast %cst_22 : f32 to vector<8x128xf32>
    %66 = vector.broadcast %cst_23 : f32 to vector<8x128xf32>
    %67 = arith.select %25, %65, %66 : vector<8x128xi1>, vector<8x128xf32>
    %68 = arith.mulf %64, %31 : vector<8x128xf32>
    %69 = arith.addf %67, %68 : vector<8x128xf32>
    %cst_24 = arith.constant 1.50140941 : f32
    %cst_25 = arith.constant 2.83297682 : f32
    %70 = vector.broadcast %cst_24 : f32 to vector<8x128xf32>
    %71 = vector.broadcast %cst_25 : f32 to vector<8x128xf32>
    %72 = arith.select %25, %70, %71 : vector<8x128xi1>, vector<8x128xf32>
    %73 = arith.mulf %69, %31 : vector<8x128xf32>
    %74 = arith.addf %72, %73 : vector<8x128xf32>
    %75 = math.absf %17 : vector<8x128xf32>
    %cst_26 = arith.constant 1.000000e+00 : f32
    %76 = vector.broadcast %cst_26 : f32 to vector<8x128xf32>
    %77 = arith.cmpf oeq, %75, %76 : vector<8x128xf32>
    %cst_27 = arith.constant 0x7F800000 : f32
    %78 = vector.broadcast %cst_27 : f32 to vector<8x128xf32>
    %79 = arith.mulf %78, %17 : vector<8x128xf32>
    %80 = arith.mulf %74, %17 : vector<8x128xf32>
    %81 = arith.select %77, %79, %80 : vector<8x128xi1>, vector<8x128xf32>
    %cst_28 = arith.constant 1.41421354 : f32
    %82 = vector.broadcast %cst_28 : f32 to vector<8x128xf32>
    %83 = arith.mulf %82, %81 : vector<8x128xf32>
    %c0_29 = arith.constant 0 : index
    %c0_30 = arith.constant 0 : index
    %84 = vector.load %arg1[%c0_29, %c0_30] : memref<8x128xf32, #tpu.memory_space<vmem>>, vector<8x128xf32>
    tpu.vector_store %arg1[%c0_29, %c0_30], %83 {strides = array<i32>} : memref<8x128xf32, #tpu.memory_space<vmem>>, vector<8x128xf32>,
    return
  }
}

module attributes {stable_mosaic.version = 11 : i64} {
  func.func @kernel(%arg0: i32, %arg1: memref<2x20xf32, #tpu.memory_space<smem>>, %arg2: memref<2xi32, #tpu.memory_space<smem>>, %arg3: memref<2x16x32xf32, #tpu.memory_space<vmem>>, %arg4: memref<1x1x32xf32, #tpu.memory_space<vmem>>, %arg5: memref<1x16x32xf32, #tpu.memory_space<vmem>>, %arg6: memref<1x1x1xf32, #tpu.memory_space<vmem>>) attributes {dimension_semantics = [#tpu.dimension_semantics<parallel>], iteration_bounds = array<i64: 2>, scalar_prefetch = 2 : i64, scratch_operands = 0 : i64, tpu.core_type = #tpu.core_type<tc>, window_params = [{pipeline_mode = #tpu.pipeline_mode<synchronous>, transform_indices = @transform_0, window_bounds = array<i64: 2, 16, 32>}, {transform_indices = @transform_1, window_bounds = array<i64: 1, 1, 32>}, {transform_indices = @transform_2, window_bounds = array<i64: 1, 16, 32>}, {transform_indices = @transform_3, window_bounds = array<i64: 1, 1, 1>}]} {
    %c0 = arith.constant 0 : index
    %c0_0 = arith.constant 0 : index
    %c0_1 = arith.constant 0 : index
    %0 = vector.load %arg5[%c0, %c0_0, %c0_1] : memref<1x16x32xf32, #tpu.memory_space<vmem>>, vector<1x16x32xf32>
    %1 = vector.shape_cast %0 : vector<1x16x32xf32> to vector<16x32xf32>
    %2 = tpu.iota {dimensions = array<i32: 1>} : vector<16x32xi32>
    %c16_i32 = arith.constant 16 : i32
    %c0_i32 = arith.constant 0 : i32
    %3 = arith.cmpi eq, %c16_i32, %c0_i32 : i32
    %c1_i32 = arith.constant 1 : i32
    %4 = arith.select %3, %c1_i32, %c16_i32 : i32
    %5 = vector.broadcast %4 : i32 to vector<16x32xi32>
    %6 = arith.remsi %2, %5 : vector<16x32xi32>
    %c0_i32_2 = arith.constant 0 : i32
    %7 = vector.broadcast %c0_i32_2 : i32 to vector<16x32xi32>
    %8 = arith.cmpi ne, %6, %7 : vector<16x32xi32>
    %c0_i32_3 = arith.constant 0 : i32
    %9 = vector.broadcast %c0_i32_3 : i32 to vector<16x32xi32>
    %10 = arith.cmpi slt, %6, %9 : vector<16x32xi32>
    %c0_i32_4 = arith.constant 0 : i32
    %11 = arith.cmpi slt, %4, %c0_i32_4 : i32
    %12 = vector.broadcast %11 : i1 to vector<16x32xi1>
    %13 = vector.broadcast %12 : vector<16x32xi1> to vector<16x32xi1>
    %14 = arith.xori %10, %13 : vector<16x32xi1>
    %15 = arith.andi %14, %8 : vector<16x32xi1>
    %16 = vector.broadcast %4 : i32 to vector<16x32xi32>
    %17 = arith.addi %6, %16 : vector<16x32xi32>
    %18 = arith.select %15, %17, %6 : vector<16x32xi1>, vector<16x32xi32>
    %19 = tpu.iota {dimensions = array<i32: 0>} : vector<16x32xi32>
    %c0_i32_5 = arith.constant 0 : i32
    %20 = vector.broadcast %c0_i32_5 : i32 to vector<16x32xi32>
    %21 = arith.cmpi ne, %18, %20 : vector<16x32xi32>
    %c15_i32 = arith.constant 15 : i32
    %22 = vector.broadcast %c15_i32 : i32 to vector<16x32xi32>
    %23 = arith.cmpi ne, %18, %22 : vector<16x32xi32>
    %c0_i32_6 = arith.constant 0 : i32
    %24 = vector.broadcast %c0_i32_6 : i32 to vector<16x32xi32>
    %25 = arith.cmpi ne, %19, %24 : vector<16x32xi32>
    %c15_i32_7 = arith.constant 15 : i32
    %26 = vector.broadcast %c15_i32_7 : i32 to vector<16x32xi32>
    %27 = arith.cmpi ne, %19, %26 : vector<16x32xi32>
    %28 = arith.index_cast %arg0 : i32 to index
    %c0_8 = arith.constant 0 : index
    %c0_9 = arith.constant 0 : index
    %29 = vector.load %arg3[%28, %c0_8, %c0_9] : memref<2x16x32xf32, #tpu.memory_space<vmem>>, vector<1x16x32xf32>
    %30 = vector.shape_cast %29 : vector<1x16x32xf32> to vector<16x32xf32>
    %c1_i32_10 = arith.constant 1 : i32
    %31 = arith.subi %c1_i32_10, %arg0 : i32
    %32 = arith.index_cast %31 : i32 to index
    %c0_11 = arith.constant 0 : index
    %c0_12 = arith.constant 0 : index
    %33 = vector.load %arg3[%32, %c0_11, %c0_12] : memref<2x16x32xf32, #tpu.memory_space<vmem>>, vector<1x16x32xf32>
    %34 = vector.shape_cast %33 : vector<1x16x32xf32> to vector<16x32xf32>
    %c0_13 = arith.constant 0 : index
    %c0_14 = arith.constant 0 : index
    %c0_15 = arith.constant 0 : index
    %35 = vector.load %arg4[%c0_13, %c0_14, %c0_15] : memref<1x1x32xf32, #tpu.memory_space<vmem>>, vector<1x1x32xf32>
    %36 = vector.shape_cast %35 : vector<1x1x32xf32> to vector<1x32xf32>
    %37 = arith.subf %34, %30 : vector<16x32xf32>
    %cst = arith.constant 0.00999999977 : f32
    %38 = vector.broadcast %cst : f32 to vector<16x32xf32>
    %39 = arith.mulf %38, %1 : vector<16x32xf32>
    %40 = arith.addf %37, %39 : vector<16x32xf32>
    %41 = vector.broadcast %36 : vector<1x32xf32> to vector<16x32xf32>
    %42 = arith.mulf %41, %40 : vector<16x32xf32>
    %43 = arith.addf %30, %42 : vector<16x32xf32>
    %44 = arith.index_cast %arg0 : i32 to index
    %c0_16 = arith.constant 0 : index
    %45 = memref.load %arg1[%44, %c0_16] : memref<2x20xf32, #tpu.memory_space<smem>>
    %46 = arith.index_cast %arg0 : i32 to index
    %c1 = arith.constant 1 : index
    %47 = memref.load %arg1[%46, %c1] : memref<2x20xf32, #tpu.memory_space<smem>>
    %48 = arith.index_cast %arg0 : i32 to index
    %c2 = arith.constant 2 : index
    %49 = memref.load %arg1[%48, %c2] : memref<2x20xf32, #tpu.memory_space<smem>>
    %50 = arith.index_cast %arg0 : i32 to index
    %c3 = arith.constant 3 : index
    %51 = memref.load %arg1[%50, %c3] : memref<2x20xf32, #tpu.memory_space<smem>>
    %52 = arith.index_cast %arg0 : i32 to index
    %c4 = arith.constant 4 : index
    %53 = memref.load %arg1[%52, %c4] : memref<2x20xf32, #tpu.memory_space<smem>>
    %54 = arith.index_cast %arg0 : i32 to index
    %c5 = arith.constant 5 : index
    %55 = memref.load %arg1[%54, %c5] : memref<2x20xf32, #tpu.memory_space<smem>>
    %56 = arith.index_cast %arg0 : i32 to index
    %c6 = arith.constant 6 : index
    %57 = memref.load %arg1[%56, %c6] : memref<2x20xf32, #tpu.memory_space<smem>>
    %58 = arith.index_cast %arg0 : i32 to index
    %c7 = arith.constant 7 : index
    %59 = memref.load %arg1[%58, %c7] : memref<2x20xf32, #tpu.memory_space<smem>>
    %60 = arith.index_cast %arg0 : i32 to index
    %c8 = arith.constant 8 : index
    %61 = memref.load %arg1[%60, %c8] : memref<2x20xf32, #tpu.memory_space<smem>>
    %62 = arith.index_cast %arg0 : i32 to index
    %c9 = arith.constant 9 : index
    %63 = memref.load %arg1[%62, %c9] : memref<2x20xf32, #tpu.memory_space<smem>>
    %64 = arith.index_cast %arg0 : i32 to index
    %c10 = arith.constant 10 : index
    %65 = memref.load %arg1[%64, %c10] : memref<2x20xf32, #tpu.memory_space<smem>>
    %66 = arith.index_cast %arg0 : i32 to index
    %c11 = arith.constant 11 : index
    %67 = memref.load %arg1[%66, %c11] : memref<2x20xf32, #tpu.memory_space<smem>>
    %68 = arith.index_cast %arg0 : i32 to index
    %c12 = arith.constant 12 : index
    %69 = memref.load %arg1[%68, %c12] : memref<2x20xf32, #tpu.memory_space<smem>>
    %70 = arith.index_cast %arg0 : i32 to index
    %c13 = arith.constant 13 : index
    %71 = memref.load %arg1[%70, %c13] : memref<2x20xf32, #tpu.memory_space<smem>>
    %72 = arith.index_cast %arg0 : i32 to index
    %c14 = arith.constant 14 : index
    %73 = memref.load %arg1[%72, %c14] : memref<2x20xf32, #tpu.memory_space<smem>>
    %74 = arith.index_cast %arg0 : i32 to index
    %c15 = arith.constant 15 : index
    %75 = memref.load %arg1[%74, %c15] : memref<2x20xf32, #tpu.memory_space<smem>>
    %76 = arith.index_cast %arg0 : i32 to index
    %c16 = arith.constant 16 : index
    %77 = memref.load %arg1[%76, %c16] : memref<2x20xf32, #tpu.memory_space<smem>>
    %78 = arith.index_cast %arg0 : i32 to index
    %c17 = arith.constant 17 : index
    %79 = memref.load %arg1[%78, %c17] : memref<2x20xf32, #tpu.memory_space<smem>>
    %80 = arith.index_cast %arg0 : i32 to index
    %c18 = arith.constant 18 : index
    %81 = memref.load %arg1[%80, %c18] : memref<2x20xf32, #tpu.memory_space<smem>>
    %82 = arith.index_cast %arg0 : i32 to index
    %c19 = arith.constant 19 : index
    %83 = memref.load %arg1[%82, %c19] : memref<2x20xf32, #tpu.memory_space<smem>>
    %cst_17 = arith.constant 0.000000e+00 : f32
    %84 = vector.broadcast %cst_17 : f32 to vector<16x32xf32>
    %c1_i32_18 = arith.constant 1 : i32
    %85 = tpu.dynamic_rotate %34 by %c1_i32_18 dim 1 : vector<16x32xf32>, i32 -> vector<16x32xf32>
    %cst_19 = arith.constant 0.000000e+00 : f32
    %86 = vector.broadcast %cst_19 : f32 to vector<16x32xf32>
    %87 = arith.select %21, %85, %86 : vector<16x32xi1>, vector<16x32xf32>
    %c31_i32 = arith.constant 31 : i32
    %88 = tpu.dynamic_rotate %34 by %c31_i32 dim 1 : vector<16x32xf32>, i32 -> vector<16x32xf32>
    %cst_20 = arith.constant 0.000000e+00 : f32
    %89 = vector.broadcast %cst_20 : f32 to vector<16x32xf32>
    %90 = arith.select %23, %88, %89 : vector<16x32xi1>, vector<16x32xf32>
    %91 = vector.broadcast %45 : f32 to vector<16x32xf32>
    %92 = arith.mulf %91, %87 : vector<16x32xf32>
    %93 = vector.broadcast %47 : f32 to vector<16x32xf32>
    %94 = arith.mulf %93, %34 : vector<16x32xf32>
    %95 = arith.addf %92, %94 : vector<16x32xf32>
    %96 = vector.broadcast %49 : f32 to vector<16x32xf32>
    %97 = arith.mulf %96, %90 : vector<16x32xf32>
    %98 = arith.addf %95, %97 : vector<16x32xf32>
    %c1_i32_21 = arith.constant 1 : i32
    %99 = tpu.dynamic_rotate %98 by %c1_i32_21 dim 0 : vector<16x32xf32>, i32 -> vector<16x32xf32>
    %cst_22 = arith.constant 0.000000e+00 : f32
    %100 = vector.broadcast %cst_22 : f32 to vector<16x32xf32>
    %101 = arith.select %25, %99, %100 : vector<16x32xi1>, vector<16x32xf32>
    %102 = arith.addf %84, %101 : vector<16x32xf32>
    %103 = vector.broadcast %51 : f32 to vector<16x32xf32>
    %104 = arith.mulf %103, %87 : vector<16x32xf32>
    %105 = vector.broadcast %53 : f32 to vector<16x32xf32>
    %106 = arith.mulf %105, %34 : vector<16x32xf32>
    %107 = arith.addf %104, %106 : vector<16x32xf32>
    %108 = vector.broadcast %55 : f32 to vector<16x32xf32>
    %109 = arith.mulf %108, %90 : vector<16x32xf32>
    %110 = arith.addf %107, %109 : vector<16x32xf32>
    %111 = arith.addf %102, %110 : vector<16x32xf32>
    %112 = vector.broadcast %57 : f32 to vector<16x32xf32>
    %113 = arith.mulf %112, %87 : vector<16x32xf32>
    %114 = vector.broadcast %59 : f32 to vector<16x32xf32>
    %115 = arith.mulf %114, %34 : vector<16x32xf32>
    %116 = arith.addf %113, %115 : vector<16x32xf32>
    %117 = vector.broadcast %61 : f32 to vector<16x32xf32>
    %118 = arith.mulf %117, %90 : vector<16x32xf32>
    %119 = arith.addf %116, %118 : vector<16x32xf32>
    %c15_i32_23 = arith.constant 15 : i32
    %120 = tpu.dynamic_rotate %119 by %c15_i32_23 dim 0 : vector<16x32xf32>, i32 -> vector<16x32xf32>
    %cst_24 = arith.constant 0.000000e+00 : f32
    %121 = vector.broadcast %cst_24 : f32 to vector<16x32xf32>
    %122 = arith.select %27, %120, %121 : vector<16x32xi1>, vector<16x32xf32>
    %123 = arith.addf %111, %122 : vector<16x32xf32>
    %c1_i32_25 = arith.constant 1 : i32
    %124 = tpu.dynamic_rotate %43 by %c1_i32_25 dim 1 : vector<16x32xf32>, i32 -> vector<16x32xf32>
    %cst_26 = arith.constant 0.000000e+00 : f32
    %125 = vector.broadcast %cst_26 : f32 to vector<16x32xf32>
    %126 = arith.select %21, %124, %125 : vector<16x32xi1>, vector<16x32xf32>
    %c31_i32_27 = arith.constant 31 : i32
    %127 = tpu.dynamic_rotate %43 by %c31_i32_27 dim 1 : vector<16x32xf32>, i32 -> vector<16x32xf32>
    %cst_28 = arith.constant 0.000000e+00 : f32
    %128 = vector.broadcast %cst_28 : f32 to vector<16x32xf32>
    %129 = arith.select %23, %127, %128 : vector<16x32xi1>, vector<16x32xf32>
    %130 = vector.broadcast %63 : f32 to vector<16x32xf32>
    %131 = arith.mulf %130, %126 : vector<16x32xf32>
    %132 = vector.broadcast %65 : f32 to vector<16x32xf32>
    %133 = arith.mulf %132, %43 : vector<16x32xf32>
    %134 = arith.addf %131, %133 : vector<16x32xf32>
    %135 = vector.broadcast %67 : f32 to vector<16x32xf32>
    %136 = arith.mulf %135, %129 : vector<16x32xf32>
    %137 = arith.addf %134, %136 : vector<16x32xf32>
    %c1_i32_29 = arith.constant 1 : i32
    %138 = tpu.dynamic_rotate %137 by %c1_i32_29 dim 0 : vector<16x32xf32>, i32 -> vector<16x32xf32>
    %cst_30 = arith.constant 0.000000e+00 : f32
    %139 = vector.broadcast %cst_30 : f32 to vector<16x32xf32>
    %140 = arith.select %25, %138, %139 : vector<16x32xi1>, vector<16x32xf32>
    %141 = arith.addf %123, %140 : vector<16x32xf32>
    %142 = vector.broadcast %69 : f32 to vector<16x32xf32>
    %143 = arith.mulf %142, %126 : vector<16x32xf32>
    %144 = vector.broadcast %71 : f32 to vector<16x32xf32>
    %145 = arith.mulf %144, %43 : vector<16x32xf32>
    %146 = arith.addf %143, %145 : vector<16x32xf32>
    %147 = vector.broadcast %73 : f32 to vector<16x32xf32>
    %148 = arith.mulf %147, %129 : vector<16x32xf32>
    %149 = arith.addf %146, %148 : vector<16x32xf32>
    %150 = arith.addf %141, %149 : vector<16x32xf32>
    %151 = vector.broadcast %75 : f32 to vector<16x32xf32>
    %152 = arith.mulf %151, %126 : vector<16x32xf32>
    %153 = vector.broadcast %77 : f32 to vector<16x32xf32>
    %154 = arith.mulf %153, %43 : vector<16x32xf32>
    %155 = arith.addf %152, %154 : vector<16x32xf32>
    %156 = vector.broadcast %79 : f32 to vector<16x32xf32>
    %157 = arith.mulf %156, %129 : vector<16x32xf32>
    %158 = arith.addf %155, %157 : vector<16x32xf32>
    %c15_i32_31 = arith.constant 15 : i32
    %159 = tpu.dynamic_rotate %158 by %c15_i32_31 dim 0 : vector<16x32xf32>, i32 -> vector<16x32xf32>
    %cst_32 = arith.constant 0.000000e+00 : f32
    %160 = vector.broadcast %cst_32 : f32 to vector<16x32xf32>
    %161 = arith.select %27, %159, %160 : vector<16x32xi1>, vector<16x32xf32>
    %162 = arith.addf %150, %161 : vector<16x32xf32>
    %163 = vector.broadcast %81 : f32 to vector<16x32xf32>
    %164 = arith.addf %162, %163 : vector<16x32xf32>
    %165 = vector.broadcast %83 : f32 to vector<1x32xf32>
    %166 = arith.mulf %165, %36 : vector<1x32xf32>
    %167 = vector.broadcast %166 : vector<1x32xf32> to vector<16x32xf32>
    %168 = arith.addf %164, %167 : vector<16x32xf32>
    %169 = arith.subf %30, %168 : vector<16x32xf32>
    %170 = math.absf %169 : vector<16x32xf32>
    %171 = vector.shape_cast %170 : vector<16x32xf32> to vector<1x16x32xf32>
    %cst_33 = arith.constant dense<0.000000e+00> : vector<1xf32>
    %172 = vector.multi_reduction <add>, %171, %cst_33 [1, 2] : vector<1x16x32xf32> to vector<1xf32>
    %173 = vector.shape_cast %172 : vector<1xf32> to vector<1x1x1xf32>
    %174 = vector.extract %173[0, 0, 0] : f32 from vector<1x1x1xf32>
    %175 = vector.broadcast %174 : f32 to vector<1x1x1xf32>
    %c0_34 = arith.constant 0 : index
    %c0_35 = arith.constant 0 : index
    %c0_36 = arith.constant 0 : index
    %176 = vector.load %arg6[%c0_34, %c0_35, %c0_36] : memref<1x1x1xf32, #tpu.memory_space<vmem>>, vector<1x1x1xf32>
    tpu.vector_store %arg6[%c0_34, %c0_35, %c0_36], %175 {strides = array<i32>} : memref<1x1x1xf32, #tpu.memory_space<vmem>>, vector<1x1x1xf32>,
    return
  }
  func.func @transform_0(%arg0: i32, %arg1: memref<2x20xf32, #tpu.memory_space<smem>>, %arg2: memref<2xi32, #tpu.memory_space<smem>>) -> (i32, i32, i32) {
    %c0_i32 = arith.constant 0 : i32
    %c0_i32_0 = arith.constant 0 : i32
    %c0_i32_1 = arith.constant 0 : i32
    %c0_i32_2 = arith.constant 0 : i32
    return %c0_i32, %c0_i32_0, %c0_i32_1 : i32, i32, i32
  }
  func.func @transform_1(%arg0: i32, %arg1: memref<2x20xf32, #tpu.memory_space<smem>>, %arg2: memref<2xi32, #tpu.memory_space<smem>>) -> (i32, i32, i32) {
    %c0_i32 = arith.constant 0 : i32
    %c0_i32_0 = arith.constant 0 : i32
    %c0_i32_1 = arith.constant 0 : i32
    return %arg0, %c0_i32, %c0_i32_0 : i32, i32, i32
  }
  func.func @transform_2(%arg0: i32, %arg1: memref<2x20xf32, #tpu.memory_space<smem>>, %arg2: memref<2xi32, #tpu.memory_space<smem>>) -> (i32, i32, i32) {
    %c0_i32 = arith.constant 0 : i32
    %c0_i32_0 = arith.constant 0 : i32
    %c0_i32_1 = arith.constant 0 : i32
    return %arg0, %c0_i32, %c0_i32_0 : i32, i32, i32
  }
  func.func @transform_3(%arg0: i32, %arg1: memref<2x20xf32, #tpu.memory_space<smem>>, %arg2: memref<2xi32, #tpu.memory_space<smem>>) -> (i32, i32, i32) {
    %c0_i32 = arith.constant 0 : i32
    %c0_i32_0 = arith.constant 0 : i32
    %c0_i32_1 = arith.constant 0 : i32
    return %arg0, %c0_i32, %c0_i32_0 : i32, i32, i32
  }
}

</mosaic_0001>

<llo_original>
// kernel: tpu_custom_call.1
$region0: #{tpu_custom_call.1}
  #allocation0 [shape = 'u32[]', space=smem, size = 0x4, offset = 0x4, fixed_abs, tag = 'smem constant byte address 0x4 - core index']
  #allocation1 [shape = 'u32[144,128]{1,0:T(1,128)}', space=vmem, size = 0x12000, scoped, tag = 'internal scratch']
  #allocation2 [shape = 's32[1]{0:T(128)S(6)}', space=smem, size = 0x200, scoped, tag = 'scoped memory for tpu_custom_call.1']
  %s0 = inlined_call_operand.<no memory space> [shape: s32[1], index: 0, kind: input, shape index: {}]
  %s1 = inlined_call_operand.hbm [shape: f32[8,128], index: 1, kind: output, shape index: {}]
  %s2 = sld [smem:[#allocation0]]
  $region14: #{tpu_custom_call.1} parent=0
    _
  %s4 = ssub.s32 1, %s2
  %s5 = scalar_select 0, %s4, %s2
  %6 = sst [smem:[#allocation2]] %s0
  $region1: #{tpu_custom_call.1} parent=0
    #allocation3 [shape = 'u8[4096]{0}', space=vmem, size = 0x1000, scoped, tag = 'output window, operand 0, single buffered']
    #allocation4 [shape = 's32[1]{0}', space=sflag, size = 0x4, scoped, tag = 'scoped memory for tpu_custom_call.1']
    %7 = vsyncpa [#allocation4], 0
    // Predicated region
    $region2: #{tpu_custom_call.1} parent=1 // pred_check
      _
    $region3: #{tpu_custom_call.1} parent=1 // pred_check_branch
      %9 = sbr.rel (0) target = $region5
    $region4: #{tpu_custom_call.1} parent=1 // pred_region
      _
    $region5: #{tpu_custom_call.1} parent=1 // pred_fallthru
      _
    %s10 = sld [smem:[#allocation2]]
    %v11 = vlaneseq
    %v12 = vstv %s10
    %v13 = vxor.u32 %v12, %v12
    %v14 = vxor.u32 %v13, 466688986
    %v15 = vadd.s32 %v11, %v12
    %v16 = vadd.s32 %v15, %v15
    %v17 = vshll.u32 %v15, 13
    %v18 = vshrl.u32 %v15, 19
    %v19 = vor.u32 %v17, %v18
    %v20 = vxor.u32 %v16, %v19
    %v21 = vadd.s32 %v16, %v20
    %v22 = vshll.u32 %v20, 15
    %v23 = vshrl.u32 %v20, 17
    %v24 = vor.u32 %v22, %v23
    %v25 = vxor.u32 %v21, %v24
    %v26 = vadd.s32 %v21, %v25
    %v27 = vshll.u32 %v25, 26
    %v28 = vshrl.u32 %v25, 6
    %v29 = vor.u32 %v27, %v28
    %v30 = vxor.u32 %v26, %v29
    %v31 = vadd.s32 %v26, %v30
    %v32 = vshll.u32 %v30, 6
    %v33 = vshrl.u32 %v30, 26
    %v34 = vor.u32 %v32, %v33
    %v35 = vxor.u32 %v31, %v34
    %v36 = vadd.s32 %v31, %v12
    %v37 = vadd.s32 %v35, %v14
    %v38 = vadd.s32 %v37, 1
    %v39 = vadd.s32 %v36, %v38
    %v40 = vshll.u32 %v38, 17
    %v41 = vshrl.u32 %v38, 15
    %v42 = vor.u32 %v40, %v41
    %v43 = vxor.u32 %v39, %v42
    %v44 = vadd.s32 %v39, %v43
    %v45 = vshll.u32 %v43, 29
    %v46 = vshrl.u32 %v43, 3
    %v47 = vor.u32 %v45, %v46
    %v48 = vxor.u32 %v44, %v47
    %v49 = vadd.s32 %v44, %v48
    %v50 = vshll.u32 %v48, 16
    %v51 = vshrl.u32 %v48, 16
    %v52 = vor.u32 %v50, %v51
    %v53 = vxor.u32 %v49, %v52
    %v54 = vadd.s32 %v49, %v53
    %v55 = vshll.u32 %v53, 24
    %v56 = vshrl.u32 %v53, 8
    %v57 = vor.u32 %v55, %v56
    %v58 = vxor.u32 %v54, %v57
    %v59 = vadd.s32 %v54, %v14
    %v60 = vadd.s32 %v58, %v12
    %v61 = vadd.s32 %v60, 2
    %v62 = vadd.s32 %v59, %v61
    %v63 = vshll.u32 %v61, 13
    %v64 = vshrl.u32 %v61, 19
    %v65 = vor.u32 %v63, %v64
    %v66 = vxor.u32 %v62, %v65
    %v67 = vadd.s32 %v62, %v66
    %v68 = vshll.u32 %v66, 15
    %v69 = vshrl.u32 %v66, 17
    %v70 = vor.u32 %v68, %v69
    %v71 = vxor.u32 %v67, %v70
    %v72 = vadd.s32 %v67, %v71
    %v73 = vshll.u32 %v71, 26
    %v74 = vshrl.u32 %v71, 6
    %v75 = vor.u32 %v73, %v74
    %v76 = vxor.u32 %v72, %v75
    %v77 = vadd.s32 %v72, %v76
    %v78 = vshll.u32 %v76, 6
    %v79 = vshrl.u32 %v76, 26
    %v80 = vor.u32 %v78, %v79
    %v81 = vxor.u32 %v77, %v80
    %v82 = vadd.s32 %v77, %v12
    %v83 = vadd.s32 %v81, %v12
    %v84 = vadd.s32 %v83, 3
    %v85 = vadd.s32 %v82, %v84
    %v86 = vshll.u32 %v84, 17
    %v87 = vshrl.u32 %v84, 15
    %v88 = vor.u32 %v86, %v87
    %v89 = vxor.u32 %v85, %v88
    %v90 = vadd.s32 %v85, %v89
    %v91 = vshll.u32 %v89, 29
    %v92 = vshrl.u32 %v89, 3
    %v93 = vor.u32 %v91, %v92
    %v94 = vxor.u32 %v90, %v93
    %v95 = vadd.s32 %v90, %v94
    %v96 = vshll.u32 %v94, 16
    %v97 = vshrl.u32 %v94, 16
    %v98 = vor.u32 %v96, %v97
    %v99 = vxor.u32 %v95, %v98
    %v100 = vadd.s32 %v95, %v99
    %v101 = vshll.u32 %v99, 24
    %v102 = vshrl.u32 %v99, 8
    %v103 = vor.u32 %v101, %v102
    %v104 = vxor.u32 %v100, %v103
    %v105 = vadd.s32 %v100, %v12
    %v106 = vadd.s32 %v104, %v14
    %v107 = vadd.s32 %v106, 4
    %v108 = vadd.s32 %v105, %v107
    %v109 = vshll.u32 %v107, 13
    %v110 = vshrl.u32 %v107, 19
    %v111 = vor.u32 %v109, %v110
    %v112 = vxor.u32 %v108, %v111
    %v113 = vadd.s32 %v108, %v112
    %v114 = vshll.u32 %v112, 15
    %v115 = vshrl.u32 %v112, 17
    %v116 = vor.u32 %v114, %v115
    %v117 = vxor.u32 %v113, %v116
    %v118 = vadd.s32 %v113, %v117
    %v119 = vshll.u32 %v117, 26
    %v120 = vshrl.u32 %v117, 6
    %v121 = vor.u32 %v119, %v120
    %v122 = vxor.u32 %v118, %v121
    %v123 = vadd.s32 %v118, %v122
    %v124 = vshll.u32 %v122, 6
    %v125 = vshrl.u32 %v122, 26
    %v126 = vor.u32 %v124, %v125
    %v127 = vxor.u32 %v123, %v126
    %v128 = vadd.s32 %v123, %v14
    %v129 = vadd.s32 %v127, %v12
    %v130 = vadd.s32 %v129, 5
    %v131 = vxor.u32 %v128, %v130
    %132 = set.rngseed %v131
    %v133 = vrng
    %v134 = vshrl.u32 %v133, 9
    %v135 = vor.u32 %v134, 1065353216
    %v137 = vsub.f32 %v135, 1.0
    %v138 = vmul.f32 %v137, 2.0
    %v139 = vadd.f32 %v138, -0.99999994
    %v140 = vmax.f32 %v139, -0.99999994
    %v141 = vsub.f32 0.0, %v140
    %v142 = vmul.f32 %v140, %v141
    %v143 = vadd.f32 %v142, 1.0
    %v144 = vlog2.pop %v143
    %v145 = vmul.f32 %v144, 0.6931472
    %v146 = vmul.f32 -0.5, %v142
    %v147 = vadd.f32 %v146, 1.0
    %v148 = vmul.f32 %v147, %v142
    %v149 = vand.u32 2147483647, %v142
    %vm150 = vcmp.lt.f32.partialorder %v149, 0.0004427343
    %v151 = vsel %vm150, %v148, %v145
    %v152 = vsub.f32 0.0, %v151
    %vm153 = vcmp.lt.f32.partialorder %v152, 5.0
    %v154 = vsub.f32 %v152, 2.5
    %v155 = vrsqrt.pop %v152
    %v156 = vmul.f32 %v152, %v155
    %vm157 = vcmp.eq.f32.partialorder %v152, inf
    %v158 = vsel %vm157, %v152, %v156
    %vm159 = vcmp.eq.f32.partialorder %v152, 0.0
    %v160 = vand.u32 %v152, 2147483648
    %v161 = vsel %vm159, %v160, %v158
    %v162 = vsub.f32 %v161, 3.0
    %v163 = vsel %vm153, %v154, %v162
    %v164 = vsel %vm153, 2.8102264e-08, -0.00020021426
    %v165 = vsel %vm153, 3.4327394e-07, 0.00010095056
    %v166 = vmul.f32 %v164, %v163
    %v167 = vadd.f32 %v165, %v166
    %v168 = vsel %vm153, -3.5233877e-06, 0.0013493432
    %v169 = vmul.f32 %v167, %v163
    %v170 = vadd.f32 %v168, %v169
    %v171 = vsel %vm153, -4.3915065e-06, -0.0036734284
    %v172 = vmul.f32 %v170, %v163
    %v173 = vadd.f32 %v171, %v172
    %v174 = vsel %vm153, 0.00021858087, 0.0057395077
    %v175 = vmul.f32 %v173, %v163
    %v176 = vadd.f32 %v174, %v175
    %v177 = vsel %vm153, -0.001253725, -0.0076224613
    %v178 = vmul.f32 %v176, %v163
    %v179 = vadd.f32 %v177, %v178
    %v180 = vsel %vm153, -0.0041776816, 0.0094388705
    %v181 = vmul.f32 %v179, %v163
    %v182 = vadd.f32 %v180, %v181
    %v183 = vsel %vm153, 0.24664073, 1.001674
    %v184 = vmul.f32 %v182, %v163
    %v185 = vadd.f32 %v183, %v184
    %v186 = vsel %vm153, 1.5014094, 2.8329768
    %v187 = vmul.f32 %v185, %v163
    %v188 = vadd.f32 %v186, %v187
    %v189 = vand.u32 2147483647, %v140
    %vm190 = vcmp.eq.f32.partialorder %v189, 1.0
    %v191 = vmul.f32 %v140, inf
    %v192 = vmul.f32 %v188, %v140
    %v193 = vsel %vm190, %v191, %v192
    %v194 = vmul.f32 %v193, 1.4142135
    %195 = vst [vmem:[#allocation3] sm:$0xff] %v194
    // Predicated region
    $region6: #{tpu_custom_call.1} parent=1 // pred_check
      _
    $region7: #{tpu_custom_call.1} parent=1 // pred_check_branch
      %197 = sbr.rel (0) target = $region9
    $region8: #{tpu_custom_call.1} parent=1 // pred_region
      %s199 = ssub.s32 128, 128
      %200 = vsyncadd [#allocation4], %s199
      %s202 = sshll.u32 [#allocation3], 4
      %s203 = int_to_ptr.vmem [resolvable:$true] %s202
      %205 = dma.vmem_to_hbm [thread:$0]  %s203, 128, %s1, [#allocation4]
    $region9: #{tpu_custom_call.1} parent=1 // pred_fallthru
      _
    // Predicated region
    $region10: #{tpu_custom_call.1} parent=1 // pred_check
      _
    $region11: #{tpu_custom_call.1} parent=1 // pred_check_branch
      %207 = sbr.rel (0) target = $region13
    $region12: #{tpu_custom_call.1} parent=1 // pred_region
      %208 = dma.done [#allocation4], 128
    $region13: #{tpu_custom_call.1} parent=1 // pred_fallthru
      _
    %209 = vsyncpa [#allocation4], 1

// kernel: joint_indi_forward.3
$region0: #{joint_indi_forward.3}
  #allocation0 [shape = 'u32[]', space=smem, size = 0x4, offset = 0x4, fixed_abs, tag = 'smem constant byte address 0x4 - core index']
  #allocation1 [shape = 'u32[144,128]{1,0:T(1,128)}', space=vmem, size = 0x12000, scoped, tag = 'internal scratch']
  #allocation2 [shape = 's32[1]{0}', space=sflag, size = 0x4, scoped, tag = 'scoped memory for joint_indi_forward.3']
  #allocation3 [shape = 'u8[1024]{0}', space=smem, size = 0x400, scoped, tag = 'prefetched SMEM operand 0']
  #allocation4 [shape = 'u8[512]{0}', space=smem, size = 0x200, scoped, tag = 'prefetched SMEM operand 1']
  %s0 = inlined_call_operand.vmem [shape: f32[2,20], index: 0, kind: input, shape index: {}]
  %s1 = inlined_call_operand.vmem [shape: s32[2], index: 1, kind: input, shape index: {}]
  %s2 = inlined_call_operand.vmem [shape: f32[2,16,32], index: 2, kind: input, shape index: {}]
  %s3 = inlined_call_operand.vmem [shape: f32[2,1,32], index: 3, kind: input, shape index: {}]
  %s4 = inlined_call_operand.vmem [shape: f32[2,16,32], index: 4, kind: input, shape index: {}]
  %s5 = inlined_call_operand.vmem [shape: f32[2,1,1], index: 5, kind: output, shape index: {}]
  %s6 = sld [smem:[#allocation0]]
  $region45: #{joint_indi_forward.3} parent=0
    _
  %s8 = ssub.s32 1, %s6
  %s9 = scalar_select 0, %s8, %s6
  %s10 = sshll.u32 %s0, 4
  %s11 = int_to_ptr.vmem [resolvable:$true] %s10
  %13 = dma.vmem_to_smem %s11, 32, [#allocation3], [#allocation2]
  %s14 = sshll.u32 %s1, 4
  %s15 = int_to_ptr.vmem [resolvable:$true] %s14
  %17 = dma.vmem_to_smem %s15, 16, [#allocation4], [#allocation2]
  %18 = dma.done [#allocation2], 48
  %19 = sfence
  loop: start=0, step=1, limit=4
  $region2: #{joint_indi_forward.3} parent=0 // loop_pre_header
    _
  $region3: #{joint_indi_forward.3} parent=0 // loop_header
    %s21 = sphi 0, %s25
    %p22 = scmp.ge.s32.totalorder %s21, 4
    %s29 = sphi 0, %s29
    %s31 = sphi 0, %s29
    %s32 = sphi 0, %s31
    %s46 = sphi 0, %s32
    %s52 = sphi 0, %s54
    %s55 = sphi 0, %s52
    %s56 = sphi 0, %s55
    %s72 = sphi 0, %s56
    %s78 = sphi 0, %s80
    %s81 = sphi 0, %s78
    %s82 = sphi 0, %s81
    %s98 = sphi 0, %s82
    %s104 = sphi 0, %s106
    %s107 = sphi 0, %s104
    %s108 = sphi 0, %s107
    %s124 = sphi 0, %s108
  $region4: #{joint_indi_forward.3} parent=0 // loop_header_branch
    %24 = sbr.rel (%p22) target = $region8
  $region5: #{joint_indi_forward.3} parent=0 // loop_body
    %s26 = ssub.s32 %s21, 1
    %s27 = ssub.s32 %s21, 2
    %s28 = sadd.s32 %s21, 1
    %s30 = sadd.s32 %s29, 1
    %p33 = scmp.eq.s32.totalorder %s21, 1
    %p34 = scmp.ne.s32.totalorder %s29, %s31
    %p35 = scmp.eq.s32.totalorder %s21, 0
    %p36 = por %p34, %p35
    %p37 = scmp.ne.s32.totalorder %s29, %s31
    %p38 = scmp.eq.s32.totalorder %s26, 1
    %p39 = por %p37, %p38
    %p40 = scmp.ne.s32.totalorder %s31, %s32
    %p41 = scmp.eq.s32.totalorder %s26, 0
    %p42 = por %p40, %p41
    %p43 = scmp.ne.s32.totalorder %s31, %s32
    %p44 = scmp.eq.s32.totalorder %s27, 1
    %p45 = por %p43, %p44
    %p47 = scmp.ne.s32.totalorder %s32, %s46
    %p48 = scmp.eq.s32.totalorder %s27, 0
    %p49 = por %p47, %p48
    %s50 = ssub.s32 %s21, %s28
    %p51 = scmp.eq.s32.totalorder %s50, 0
    %s53 = sadd.s32 %s52, 1
    %s54 = scalar_select %p51, %s52, %s53
    %p57 = pneg %p51
    %p58 = scmp.eq.s32.totalorder %s21, 1
    %p59 = por %p57, %p58
    %p60 = scmp.ne.s32.totalorder %s52, %s55
    %p61 = scmp.eq.s32.totalorder %s21, 0
    %p62 = por %p60, %p61
    %p63 = scmp.ne.s32.totalorder %s52, %s55
    %p64 = scmp.eq.s32.totalorder %s26, 1
    %p65 = por %p63, %p64
    %p66 = scmp.ne.s32.totalorder %s55, %s56
    %p67 = scmp.eq.s32.totalorder %s26, 0
    %p68 = por %p66, %p67
    %p69 = scmp.ne.s32.totalorder %s55, %s56
    %p70 = scmp.eq.s32.totalorder %s27, 1
    %p71 = por %p69, %p70
    %p73 = scmp.ne.s32.totalorder %s56, %s72
    %p74 = scmp.eq.s32.totalorder %s27, 0
    %p75 = por %p73, %p74
    %s76 = ssub.s32 %s21, %s28
    %p77 = scmp.eq.s32.totalorder %s76, 0
    %s79 = sadd.s32 %s78, 1
    %s80 = scalar_select %p77, %s78, %s79
    %p83 = pneg %p77
    %p84 = scmp.eq.s32.totalorder %s21, 1
    %p85 = por %p83, %p84
    %p86 = scmp.ne.s32.totalorder %s78, %s81
    %p87 = scmp.eq.s32.totalorder %s21, 0
    %p88 = por %p86, %p87
    %p89 = scmp.ne.s32.totalorder %s78, %s81
    %p90 = scmp.eq.s32.totalorder %s26, 1
    %p91 = por %p89, %p90
    %p92 = scmp.ne.s32.totalorder %s81, %s82
    %p93 = scmp.eq.s32.totalorder %s26, 0
    %p94 = por %p92, %p93
    %p95 = scmp.ne.s32.totalorder %s81, %s82
    %p96 = scmp.eq.s32.totalorder %s27, 1
    %p97 = por %p95, %p96
    %p99 = scmp.ne.s32.totalorder %s82, %s98
    %p100 = scmp.eq.s32.totalorder %s27, 0
    %p101 = por %p99, %p100
    %s102 = ssub.s32 %s21, %s28
    %p103 = scmp.eq.s32.totalorder %s102, 0
    %s105 = sadd.s32 %s104, 1
    %s106 = scalar_select %p103, %s104, %s105
    %p109 = pneg %p103
    %p110 = scmp.eq.s32.totalorder %s21, 1
    %p111 = por %p109, %p110
    %p112 = scmp.ne.s32.totalorder %s104, %s107
    %p113 = scmp.eq.s32.totalorder %s21, 0
    %p114 = por %p112, %p113
    %p115 = scmp.ne.s32.totalorder %s104, %s107
    %p116 = scmp.eq.s32.totalorder %s26, 1
    %p117 = por %p115, %p116
    %p118 = scmp.ne.s32.totalorder %s107, %s108
    %p119 = scmp.eq.s32.totalorder %s26, 0
    %p120 = por %p118, %p119
    %p121 = scmp.ne.s32.totalorder %s107, %s108
    %p122 = scmp.eq.s32.totalorder %s27, 1
    %p123 = por %p121, %p122
    %p125 = scmp.ne.s32.totalorder %s108, %s124
    %p126 = scmp.eq.s32.totalorder %s27, 0
    %p127 = por %p125, %p126
    %p128 = scmp.le.s32.totalorder 1, %s21
    %p129 = scmp.lt.s32.totalorder %s21, 3
    %p130 = pnand %p128, %p129
    %p131 = pneg %p130
    // Predicated region
    $region9: #{joint_indi_forward.3} parent=5 // pred_check
      _
    $region10: #{joint_indi_forward.3} parent=5 // pred_check_branch
      %133 = sbr.rel (%p130) target = $region12
    $region11: #{joint_indi_forward.3} parent=5 // pred_region
      %s134 = ssub.s32 %s21, 1
      // Predicated region
      $region13: #{joint_indi_forward.3} parent=11 // pred_check
        %p135 = pneg %p42
      $region14: #{joint_indi_forward.3} parent=11 // pred_check_branch
        %137 = sbr.rel (%p135) target = $region16
      $region15: #{joint_indi_forward.3} parent=11 // pred_region
        _
      $region16: #{joint_indi_forward.3} parent=11 // pred_fallthru
        _
    $region12: #{joint_indi_forward.3} parent=5 // pred_fallthru
      _
    %p138 = scmp.lt.s32.totalorder %s21, 2
    // Predicated region
    $region17: #{joint_indi_forward.3} parent=5 // pred_check
      %p139 = pneg %p138
    $region18: #{joint_indi_forward.3} parent=5 // pred_check_branch
      %141 = sbr.rel (%p139) target = $region20
    $region19: #{joint_indi_forward.3} parent=5 // pred_region
      // Predicated region
      $region21: #{joint_indi_forward.3} parent=19 // pred_check
        %p142 = pneg %p62
      $region22: #{joint_indi_forward.3} parent=19 // pred_check_branch
        %144 = sbr.rel (%p142) target = $region24
      $region23: #{joint_indi_forward.3} parent=19 // pred_region
        %p145 = scmp.lt.s32.totalorder %s21, 1
        %s146 = scalar_select %p145, %s21, 1
        %s147 = scalar_lea.vmem %s3, %s146
      $region24: #{joint_indi_forward.3} parent=19 // pred_fallthru
        _
      // Predicated region
      $region25: #{joint_indi_forward.3} parent=19 // pred_check
        %p148 = pneg %p88
      $region26: #{joint_indi_forward.3} parent=19 // pred_check_branch
        %150 = sbr.rel (%p148) target = $region28
      $region27: #{joint_indi_forward.3} parent=19 // pred_region
        %p151 = scmp.lt.s32.totalorder %s21, 1
        %s152 = scalar_select %p151, %s21, 1
        %s153 = smul.addr %s152, 2
        %s154 = smul.addr %s153, 8
        %s155 = scalar_lea.vmem %s4, %s154
      $region28: #{joint_indi_forward.3} parent=19 // pred_fallthru
        _
    $region20: #{joint_indi_forward.3} parent=5 // pred_fallthru
      _
    %p156 = scmp.le.s32.totalorder 1, %s21
    %p157 = scmp.lt.s32.totalorder %s21, 3
    %p158 = pnand %p156, %p157
    %p159 = pneg %p158
    // Predicated region
    $region29: #{joint_indi_forward.3} parent=5 // pred_check
      _
    $region30: #{joint_indi_forward.3} parent=5 // pred_check_branch
      %161 = sbr.rel (%p158) target = $region32
    $region31: #{joint_indi_forward.3} parent=5 // pred_region
      %s162 = ssub.s32 %s21, 1
      %p163 = pneg %p42
      %p164 = pneg %p39
      %p165 = scmp.lt.s32.totalorder %s26, 1
      %s166 = scalar_select %p165, %s26, 1
      %s167 = scalar_lea.vmem %s3, %s166
      %p168 = pneg %p68
      %p169 = pneg %p65
      %p170 = scmp.lt.s32.totalorder %s26, 1
      %s171 = scalar_select %p170, %s26, 1
      %s172 = smul.addr %s171, 2
      %s173 = smul.addr %s172, 8
      %s174 = scalar_lea.vmem %s4, %s173
      %p175 = pneg %p94
      %p176 = pneg %p91
      %p177 = pneg %p120
      %p178 = pneg %p117
      %p179 = scmp.lt.s32.totalorder %s26, 1
      %s180 = scalar_select %p179, %s26, 1
      %s181 = scalar_lea.vmem %s5, %s180
      %p182 = scmp.lt.s32.totalorder %s26, 1
      %s183 = scalar_select %p182, %s26, 1
      %s184 = scalar_lea.vmem %s3, %s183
      %p185 = scmp.lt.s32.totalorder %s26, 1
      %s186 = scalar_select %p185, %s26, 1
      %s187 = smul.addr %s186, 2
      %s188 = smul.addr %s187, 8
      %s189 = scalar_lea.vmem %s4, %s188
      %p190 = scmp.lt.s32.totalorder %s26, 1
      %s191 = scalar_select %p190, %s26, 1
      %s192 = scalar_lea.vmem %s5, %s191
      %v193 = vld [vmem:[%s189] sm:$0xff]
      %v194 = vld [vmem:[%s189 + $0x8] sm:$0xff]
      %v195 = vlaneseq
      %v196 = vand.u32 %v195, 127
      %vm197 = vcmp.lt.s32.totalorder %v196, 0
      %v198 = vsub.s32 0, %v196
      %v199 = vsel %vm197, %v198, %v196
      %v200 = vshrl.u32 %v199, 4
      %v201 = vand.u32 %v199, 15
      %v202 = vsub.s32 0, %v201
      %v203 = vsel %vm197, %v202, %v201
      %vm204 = vcmp.ne.s32.totalorder %v203, 0
      %vm205 = vcmp.lt.s32.totalorder %v203, 0
      %vm206 = vmand %vm205, %vm204
      %v207 = vadd.s32 %v203, 16
      %v208 = vsel %vm206, %v207, %v203
      %v209 = vlaneseq
      %v210 = vshrl.u32 %v209, 7
      %v211 = vadd.s32 %v210, 8
      %vm212 = vcmp.ne.s32.totalorder %v208, 0
      %vm213 = vcmp.ne.s32.totalorder %v208, 15
      %vm214 = vcmp.ne.s32.totalorder %v210, 0
      %vm215 = vcmp.ne.s32.totalorder %v211, 0
      %vm216 = vcmp.ne.s32.totalorder %v210, 15
      %vm217 = vcmp.ne.s32.totalorder %v211, 15
      %s218 = smul.u32 %s26, 16
      %s219 = scalar_lea.vmem %s2, %s218
      %v220 = vld [vmem:[%s219] sm:$0xff]
      %v221 = vld [vmem:[%s219 + $0x8] sm:$0xff]
      %s222 = ssub.s32 1, %s26
      %s223 = smul.u32 %s222, 16
      %s224 = scalar_lea.vmem %s2, %s223
      %v225 = vld [vmem:[%s224] sm:$0xff]
      %v226 = vld [vmem:[%s224 + $0x8] sm:$0xff]
      %v227 = vld [vmem:[%s184] sm:$0x1]
      %v228 = vsub.f32 %v225, %v220
      %v229 = vsub.f32 %v226, %v221
      %v230 = vmul.f32 %v193, 0.01
      %v231 = vmul.f32 %v194, 0.01
      %v232 = vadd.f32 %v228, %v230
      %v233 = vadd.f32 %v229, %v231
      %v235 = vlaneseq
      %v236 = vshrl.u32 %v235, 7
      %v237 = vsub.s32 0, %v236
      %v238 = vrot.slane %v227, %v237
      %v240 = vmul.f32 %v238, %v232
      %v241 = vmul.f32 %v238, %v233
      %v242 = vadd.f32 %v220, %v240
      %v243 = vadd.f32 %v221, %v241
      %s244 = smul.u32 %s26, 128
      %s245 = sld [smem:[#allocation3 + %s244]]
      %s246 = sadd.s32 %s244, 1
      %s247 = sld [smem:[#allocation3 + %s246]]
      %s248 = sadd.s32 %s244, 2
      %s249 = sld [smem:[#allocation3 + %s248]]
      %s250 = sadd.s32 %s244, 3
      %s251 = sld [smem:[#allocation3 + %s250]]
      %s252 = sadd.s32 %s244, 4
      %s253 = sld [smem:[#allocation3 + %s252]]
      %s254 = sadd.s32 %s244, 5
      %s255 = sld [smem:[#allocation3 + %s254]]
      %s256 = sadd.s32 %s244, 6
      %s257 = sld [smem:[#allocation3 + %s256]]
      %s258 = sadd.s32 %s244, 7
      %s259 = sld [smem:[#allocation3 + %s258]]
      %s260 = sadd.s32 %s244, 8
      %s261 = sld [smem:[#allocation3 + %s260]]
      %s262 = sadd.s32 %s244, 9
      %s263 = sld [smem:[#allocation3 + %s262]]
      %s264 = sadd.s32 %s244, 10
      %s265 = sld [smem:[#allocation3 + %s264]]
      %s266 = sadd.s32 %s244, 11
      %s267 = sld [smem:[#allocation3 + %s266]]
      %s268 = sadd.s32 %s244, 12
      %s269 = sld [smem:[#allocation3 + %s268]]
      %s270 = sadd.s32 %s244, 13
      %s271 = sld [smem:[#allocation3 + %s270]]
      %s272 = sadd.s32 %s244, 14
      %s273 = sld [smem:[#allocation3 + %s272]]
      %s274 = sadd.s32 %s244, 15
      %s275 = sld [smem:[#allocation3 + %s274]]
      %s276 = sadd.s32 %s244, 16
      %s277 = sld [smem:[#allocation3 + %s276]]
      %s278 = sadd.s32 %s244, 17
      %s279 = sld [smem:[#allocation3 + %s278]]
      %s280 = sadd.s32 %s244, 18
      %s281 = sld [smem:[#allocation3 + %s280]]
      %s282 = sadd.s32 %s244, 19
      %s283 = sld [smem:[#allocation3 + %s282]]
      %vm284 = vcmask 1047808
      %285 = vrot.lane.b32.xlu0 %v225, 32
      %v286 = vpop.permute.xlu0 %285
      %v287 = vsel %vm284, %v286, %v225
      %288 = vrot.lane.b32.xlu0 %v226, 32
      %v289 = vpop.permute.xlu0 %288
      %v290 = vsel %vm284, %v289, %v226
      %291 = vrot.lane.b32.xlu0 %v287, 32
      %v292 = vpop.permute.xlu0 %291
      %293 = vrot.lane.b32.xlu0 %v290, 32
      %v294 = vpop.permute.xlu0 %293
      %v295 = vsel %vm284, %v292, %v225
      %v296 = vsel %vm284, %v294, %v226
      %299 = vrot.lane.b32.xlu0 %v295, 97
      %v300 = vpop.permute.xlu0 %299
      %301 = vrot.lane.b32.xlu0 %v296, 97
      %v302 = vpop.permute.xlu0 %301
      %v305 = vsel %vm212, %v300, 0.0
      %v306 = vsel %vm212, %v302, 0.0
      %307 = vrot.lane.b32.xlu0 %v295, 127
      %v308 = vpop.permute.xlu0 %307
      %309 = vrot.lane.b32.xlu0 %v296, 127
      %v310 = vpop.permute.xlu0 %309
      %v313 = vsel %vm213, %v308, 0.0
      %v314 = vsel %vm213, %v310, 0.0
      %v315 = vstv %s245
      %v316 = vmul.f32 %v315, %v305
      %v317 = vmul.f32 %v315, %v306
      %v318 = vstv %s247
      %v319 = vmul.f32 %v318, %v225
      %v320 = vmul.f32 %v318, %v226
      %v321 = vadd.f32 %v316, %v319
      %v322 = vadd.f32 %v317, %v320
      %v323 = vstv %s249
      %v324 = vmul.f32 %v323, %v313
      %v325 = vmul.f32 %v323, %v314
      %v326 = vadd.f32 %v321, %v324
      %v327 = vadd.f32 %v322, %v325
      %v328 = vrot.slane %v326, 7
      %v329 = vrot.slane %v327, 7
      %vm330 = vcmp.lt.s32.totalorder %v210, 1
      %v331 = vsel %vm330, %v328, %v329
      %v332 = vsel %vm330, %v329, %v328
      %v333 = vsel %vm214, %v332, 0.0
      %v334 = vsel %vm215, %v331, 0.0
      %v335 = vadd.f32 %v333, 0.0
      %v336 = vadd.f32 %v334, 0.0
      %v337 = vstv %s251
      %v338 = vmul.f32 %v337, %v305
      %v339 = vmul.f32 %v337, %v306
      %v340 = vstv %s253
      %v341 = vmul.f32 %v340, %v225
      %v342 = vmul.f32 %v340, %v226
      %v343 = vadd.f32 %v338, %v341
      %v344 = vadd.f32 %v339, %v342
      %v345 = vstv %s255
      %v346 = vmul.f32 %v345, %v313
      %v347 = vmul.f32 %v345, %v314
      %v348 = vadd.f32 %v343, %v346
      %v349 = vadd.f32 %v344, %v347
      %v350 = vadd.f32 %v335, %v348
      %v351 = vadd.f32 %v336, %v349
      %v352 = vstv %s257
      %v353 = vmul.f32 %v352, %v305
      %v354 = vmul.f32 %v352, %v306
      %v355 = vstv %s259
      %v356 = vmul.f32 %v355, %v225
      %v357 = vmul.f32 %v355, %v226
      %v358 = vadd.f32 %v353, %v356
      %v359 = vadd.f32 %v354, %v357
      %v360 = vstv %s261
      %v361 = vmul.f32 %v360, %v313
      %v362 = vmul.f32 %v360, %v314
      %v363 = vadd.f32 %v358, %v361
      %v364 = vadd.f32 %v359, %v362
      %v365 = vrot.slane %v363, 1
      %v366 = vrot.slane %v364, 1
      %vm367 = vcmp.lt.s32.totalorder %v210, 7
      %v368 = vsel %vm367, %v365, %v366
      %v369 = vsel %vm367, %v366, %v365
      %v370 = vsel %vm216, %v368, 0.0
      %v371 = vsel %vm217, %v369, 0.0
      %v372 = vadd.f32 %v350, %v370
      %v373 = vadd.f32 %v351, %v371
      %374 = vrot.lane.b32.xlu0 %v242, 32
      %v375 = vpop.permute.xlu0 %374
      %v376 = vsel %vm284, %v375, %v242
      %377 = vrot.lane.b32.xlu0 %v243, 32
      %v378 = vpop.permute.xlu0 %377
      %v379 = vsel %vm284, %v378, %v243
      %380 = vrot.lane.b32.xlu0 %v376, 32
      %v381 = vpop.permute.xlu0 %380
      %382 = vrot.lane.b32.xlu0 %v379, 32
      %v383 = vpop.permute.xlu0 %382
      %v384 = vsel %vm284, %v381, %v242
      %v385 = vsel %vm284, %v383, %v243
      %388 = vrot.lane.b32.xlu0 %v384, 97
      %v389 = vpop.permute.xlu0 %388
      %390 = vrot.lane.b32.xlu0 %v385, 97
      %v391 = vpop.permute.xlu0 %390
      %v394 = vsel %vm212, %v389, 0.0
      %v395 = vsel %vm212, %v391, 0.0
      %396 = vrot.lane.b32.xlu0 %v384, 127
      %v397 = vpop.permute.xlu0 %396
      %398 = vrot.lane.b32.xlu0 %v385, 127
      %v399 = vpop.permute.xlu0 %398
      %v402 = vsel %vm213, %v397, 0.0
      %v403 = vsel %vm213, %v399, 0.0
      %v404 = vstv %s263
      %v405 = vmul.f32 %v404, %v394
      %v406 = vmul.f32 %v404, %v395
      %v407 = vstv %s265
      %v408 = vmul.f32 %v407, %v242
      %v409 = vmul.f32 %v407, %v243
      %v410 = vadd.f32 %v405, %v408
      %v411 = vadd.f32 %v406, %v409
      %v412 = vstv %s267
      %v413 = vmul.f32 %v412, %v402
      %v414 = vmul.f32 %v412, %v403
      %v415 = vadd.f32 %v410, %v413
      %v416 = vadd.f32 %v411, %v414
      %v417 = vrot.slane %v415, 7
      %v418 = vrot.slane %v416, 7
      %v419 = vsel %vm330, %v417, %v418
      %v420 = vsel %vm330, %v418, %v417
      %v421 = vsel %vm214, %v420, 0.0
      %v422 = vsel %vm215, %v419, 0.0
      %v423 = vadd.f32 %v372, %v421
      %v424 = vadd.f32 %v373, %v422
      %v425 = vstv %s269
      %v426 = vmul.f32 %v425, %v394
      %v427 = vmul.f32 %v425, %v395
      %v428 = vstv %s271
      %v429 = vmul.f32 %v428, %v242
      %v430 = vmul.f32 %v428, %v243
      %v431 = vadd.f32 %v426, %v429
      %v432 = vadd.f32 %v427, %v430
      %v433 = vstv %s273
      %v434 = vmul.f32 %v433, %v402
      %v435 = vmul.f32 %v433, %v403
      %v436 = vadd.f32 %v431, %v434
      %v437 = vadd.f32 %v432, %v435
      %v438 = vadd.f32 %v423, %v436
      %v439 = vadd.f32 %v424, %v437
      %v440 = vstv %s275
      %v441 = vmul.f32 %v440, %v394
      %v442 = vmul.f32 %v440, %v395
      %v443 = vstv %s277
      %v444 = vmul.f32 %v443, %v242
      %v445 = vmul.f32 %v443, %v243
      %v446 = vadd.f32 %v441, %v444
      %v447 = vadd.f32 %v442, %v445
      %v448 = vstv %s279
      %v449 = vmul.f32 %v448, %v402
      %v450 = vmul.f32 %v448, %v403
      %v451 = vadd.f32 %v446, %v449
      %v452 = vadd.f32 %v447, %v450
      %v453 = vrot.slane %v451, 1
      %v454 = vrot.slane %v452, 1
      %v455 = vsel %vm367, %v453, %v454
      %v456 = vsel %vm367, %v454, %v453
      %v457 = vsel %vm216, %v455, 0.0
      %v458 = vsel %vm217, %v456, 0.0
      %v459 = vadd.f32 %v438, %v457
      %v460 = vadd.f32 %v439, %v458
      %v461 = vstv %s281
      %v462 = vadd.f32 %v459, %v461
      %v463 = vadd.f32 %v460, %v461
      %v464 = vstv %s283
      %v465 = vmul.f32 %v464, %v227
      %v467 = vlaneseq
      %v468 = vshrl.u32 %v467, 7
      %v469 = vsub.s32 0, %v468
      %v470 = vrot.slane %v465, %v469
      %v472 = vadd.f32 %v462, %v470
      %v473 = vadd.f32 %v463, %v470
      %v474 = vsub.f32 %v220, %v472
      %v475 = vsub.f32 %v221, %v473
      %v476 = vand.u32 2147483647, %v474
      %v477 = vand.u32 2147483647, %v475
      %vm478 = vcmask 261120
      %v479 = vsel %vm478, %v476, 0.0
      %v480 = vsel %vm478, %v477, 0.0
      %v481 = vadd.f32 %v479, %v480
      %482 = vadd.xlane.f32.xlu0 %v481
      %v483 = vpop.xlane.xlu0 %482
      %v484 = vrot.slane %v483, 4
      %v485 = vadd.f32 %v483, %v484
      %v486 = vrot.slane %v485, 2
      %v487 = vadd.f32 %v485, %v486
      %v488 = vrot.slane %v487, 1
      %v489 = vadd.f32 %v487, %v488
      %s490 = vtos %v489
      %v491 = vstv %s490
      %vm492 = vcmask 0
      %493 = vst.msk [vmem:[%s192] sm:$0x1] %vm492, %v491
      %p494 = scmp.lt.s32.totalorder %s26, 1
      %s495 = scalar_select %p494, %s26, 1
      %s496 = scalar_lea.vmem %s5, %s495
      // Predicated region
      $region33: #{joint_indi_forward.3} parent=31 // pred_check
        %p497 = pneg %p117
      $region34: #{joint_indi_forward.3} parent=31 // pred_check_branch
        %499 = sbr.rel (%p497) target = $region36
      $region35: #{joint_indi_forward.3} parent=31 // pred_region
        _
      $region36: #{joint_indi_forward.3} parent=31 // pred_fallthru
        _
    $region32: #{joint_indi_forward.3} parent=5 // pred_fallthru
      _
    %p500 = scmp.le.s32.totalorder 2, %s21
    // Predicated region
    $region37: #{joint_indi_forward.3} parent=5 // pred_check
      %p501 = pneg %p500
    $region38: #{joint_indi_forward.3} parent=5 // pred_check_branch
      %503 = sbr.rel (%p501) target = $region40
    $region39: #{joint_indi_forward.3} parent=5 // pred_region
      %s504 = ssub.s32 %s21, 2
      // Predicated region
      $region41: #{joint_indi_forward.3} parent=39 // pred_check
        %p505 = pneg %p123
      $region42: #{joint_indi_forward.3} parent=39 // pred_check_branch
        %507 = sbr.rel (%p505) target = $region44
      $region43: #{joint_indi_forward.3} parent=39 // pred_region
        %p508 = scmp.lt.s32.totalorder %s27, 1
        %s509 = scalar_select %p508, %s27, 1
        %s510 = scalar_lea.vmem %s5, %s509
      $region44: #{joint_indi_forward.3} parent=39 // pred_fallthru
        _
    $region40: #{joint_indi_forward.3} parent=5 // pred_fallthru
      _
  $region6: #{joint_indi_forward.3} parent=0 // loop_footer
    %s25 = sadd.s32 1, %s21
  $region7: #{joint_indi_forward.3} parent=0 // loop_footer_branch
    %20 = sbr.rel target = $region3
  $region8: #{joint_indi_forward.3} parent=0 // loop_exit
    _

</llo_original>
